<compile_context>
chip_gen: v7x
topology: tpu7x:2x2x1
jax: 0.10.0
libtpu: 0.0.40
codegen_flags: <defaults>
</compile_context>

<pallas_src>
import jax
import jax.numpy as jnp
import numpy as np
from jax.experimental import pallas as pl
from jax.experimental.pallas import tpu as pltpu

SMOOTH_D = 0.1                      # smooth_relu_thresh
_INV_2D3 = 1.0 / (2.0 * SMOOTH_D ** 3)
HIDDEN = 64                         # ICNN layer_sizes = [64, 64]
CTRL_HIDDEN = 16                    # ControlNet(4, 4*4, 2)


def _round_up(n, m):
    return ((n + m - 1) // m) * m


def _smooth_relu(x, d=SMOOTH_D):
    r = jnp.maximum(x, 0.0)
    r3 = r * r * r
    sq = (2.0 * d * r3 - r3 * r) * _INV_2D3      # constant mul, no divide
    return jnp.where(r < d, sq, x - d / 2.0)


# ----------------------------------- kernel ----------------------------------
def kfunction_kernel(
    data_ref,   # (4, TB)   feature-major data block
    # ICNN params (torch layout) + precomputed softplus(U) and g0:
    w0_ref, b0_ref, w1_ref, b1_ref,   # (H, 1) each
    usp_ref,    # (H, H)    softplus(U)      (precomputed, param-only)
    g0_ref,     # (H, 1)    ICNN(0) column   (precomputed, param-only)
    # fused ControlNet params, feature-major (s-block | d-block stacked on rows):
    cw1_ref,    # (32, 4)
    cb1_ref,    # (32, 1)
    cw2_ref,    # (32, 32)  block-diagonal
    cb2_ref,    # (32, 1)
    cw3_ref,    # (4, 32)   block-diagonal
    cb3_ref,    # (4, 1)
    # outputs
    out1_ref,   # (H, TB)   1 / smooth_relu(g - g0), (hidden, batch) lane-dense
    ctrl_ref,   # (4, TB)   rows = [s_u(2) | d_u(2)], lane-dense
):
    data = data_ref[...]                           # (4, TB)

    # ---- ICNN path, batch on the lane axis ----------------------------------
    x0 = data[0:1, :]                              # (1, TB)
    hx = 36.0 - x0 * x0                            # h(x) = 36 - x0^2

    # layer 0: rank-1 outer product -> VPU broadcast multiply (no MXU)
    z1 = _smooth_relu(w0_ref[...] * hx + b0_ref[...])          # (H, TB)
    # layer 1: the only real matmul, batch on the MXU N dimension
    g = _smooth_relu(
        w1_ref[...] * hx + b1_ref[...]
        + jnp.dot(usp_ref[...], z1, preferred_element_type=jnp.float32))  # (H, TB)

    s = _smooth_relu(g - g0_ref[...])              # (H, TB), s >= 0 everywhere
    r = pl.reciprocal(s, approx=True)              # EUP slot (VALU-free)
    # one Newton step for accuracy; keep exact +inf where s == 0 (ref: 1/0).
    out1_ref[...] = jnp.where(s > 0.0, r * (2.0 - s * r), jnp.inf)

    # ---- fused ControlNets (s | d), feature-major ----------------------------
    x2 = data[0:2, :]                              # (2, TB)
    h1 = jnp.maximum(
        jnp.dot(cw1_ref[...], data, preferred_element_type=jnp.float32)
        + cb1_ref[...], 0.0)                       # (32, TB)
    h2 = jnp.maximum(
        jnp.dot(cw2_ref[...], h1, preferred_element_type=jnp.float32)
        + cb2_ref[...], 0.0)                       # (32, TB)
    out = jnp.dot(cw3_ref[...], h2, preferred_element_type=jnp.float32) \
        + cb3_ref[...]                             # (4, TB) = [s_out ; d_out]
    ctrl_ref[...] = out * jnp.concatenate([x2, x2], axis=0)   # sublane stack


# ---------------------------------- wrapper -----------------------------------
def _pick_tile(Bp, tile_b):
    tile = min(tile_b, Bp)
    # >= 2 grid steps when there is enough batch (feeds both TCs on v7x;
    # harmless elsewhere since per-step work stays large).
    if Bp >= 256:
        tile = min(tile, _round_up(Bp // 2, 128))
    tile = max(tile, 128)
    while Bp % tile != 0:          # 128 always divides Bp, so this terminates
        tile -= 128
    return tile


def kfunction_forward(data, kp, tile_b=2048):
    """data: (B, 4) float32.  kp: prepared (hoisted/fused) parameters.

    Returns (out1 (HIDDEN, B), d_u (B, 2), s_u (B, 2)) matching PyTorch."""
    B = data.shape[0]
    Bp = _round_up(B, 128)
    tile = _pick_tile(Bp, tile_b)
    data_p = jnp.pad(data, ((0, Bp - B), (0, 0))) if Bp != B else data
    data_t = data_p.T                              # (4, Bp), layout plumbing only

    weights = [kp["w0"], kp["b0"], kp["w1"], kp["b1"], kp["u_sp"], kp["g0"],
               kp["cw1"], kp["cb1"], kp["cw2"], kp["cb2"], kp["cw3"], kp["cb3"]]
    const_map = lambda i: (0, 0)                   # weights stay VMEM-resident
    w_specs = [pl.BlockSpec(w.shape, const_map) for w in weights]

    flops = int(Bp) * (2 * HIDDEN * HIDDEN                          # u_sp @ z1
                       + 2 * (2 * CTRL_HIDDEN * 4                   # fused L1
                              + (2 * CTRL_HIDDEN) ** 2              # fused L2
                              + 4 * (2 * CTRL_HIDDEN))              # fused L3
                       + 16 * HIDDEN)                               # elementwise
    bytes_accessed = int(Bp) * (4 * 4 + HIDDEN * 4 + 4 * 4) + \
        sum(int(np.prod(w.shape)) * 4 for w in weights)

    out1, ctrl = pl.pallas_call(
        kfunction_kernel,
        out_shape=(
            jax.ShapeDtypeStruct((HIDDEN, Bp), jnp.float32),
            jax.ShapeDtypeStruct((4, Bp), jnp.float32),
        ),
        grid=(Bp // tile,),
        in_specs=[pl.BlockSpec((4, tile), lambda i: (0, i))]      # data (4, Bp)
                 + w_specs,
        out_specs=(pl.BlockSpec((HIDDEN, tile), lambda i: (0, i)),
                   pl.BlockSpec((4, tile), lambda i: (0, i))),
        compiler_params=pltpu.CompilerParams(
            dimension_semantics=("parallel",)),
        cost_estimate=pl.CostEstimate(flops=flops, transcendentals=0,
                                      bytes_accessed=bytes_accessed),
    )(data_t, *weights)

    # Padded columns of out1 may contain inf/garbage; slice only when padded.
    if Bp != B:
        out1 = out1[:, :B]
        ctrl = ctrl[:, :B]
    s_u = ctrl[0:2, :].T
    d_u = ctrl[2:4, :].T
    return out1, d_u, s_u


# --------------------- parameter generation / preparation --------------------
def make_raw_params(key):
    """Deterministic synthetic parameters in PyTorch layout."""
    ks = jax.random.split(key, 17)

    def xn(k, shape):
        fan_in = shape[-1]
        fan_out = shape[0] if len(shape) > 1 else 1
        std = float(np.sqrt(2.0 / (fan_in + fan_out)))
        return (std * jax.random.normal(k, shape)).astype(jnp.float32)

    return dict(
        w0=xn(ks[0], (HIDDEN, 1)), b0=xn(ks[1], (HIDDEN, 1)),
        w1=xn(ks[2], (HIDDEN, 1)), b1=xn(ks[3], (HIDDEN, 1)),
        u0=xn(ks[4], (HIDDEN, HIDDEN)),
        sw1=xn(ks[5], (CTRL_HIDDEN, 4)), sb1=xn(ks[6], (1, CTRL_HIDDEN)),
        sw2=xn(ks[7], (CTRL_HIDDEN, CTRL_HIDDEN)), sb2=xn(ks[8], (1, CTRL_HIDDEN)),
        sw3=xn(ks[9], (2, CTRL_HIDDEN)), sb3=xn(ks[10], (1, 2)),
        dw1=xn(ks[11], (CTRL_HIDDEN, 4)), db1=xn(ks[12], (1, CTRL_HIDDEN)),
        dw2=xn(ks[13], (CTRL_HIDDEN, CTRL_HIDDEN)), db2=xn(ks[14], (1, CTRL_HIDDEN)),
        dw3=xn(ks[15], (2, CTRL_HIDDEN)), db3=xn(ks[16], (1, 2)),
    )


def prepare_params(raw):
    """One-time (per parameter set) hoisting: softplus(U), g0, fused controls.

    ControlNet weights are fused block-diagonally and kept in feature-major
    (out_features, in_features) layout so the kernel computes W @ x."""
    u_sp = jax.nn.softplus(raw["u0"])                              # (H, H)
    z1_0 = _smooth_relu(raw["b0"])                                 # (H, 1)
    g0 = _smooth_relu(raw["b1"] + u_sp @ z1_0)                     # (H, 1)

    hc = CTRL_HIDDEN
    z_hh = jnp.zeros((hc, hc), jnp.float32)
    z_2h = jnp.zeros((2, hc), jnp.float32)
    cw1 = jnp.concatenate([raw["sw1"], raw["dw1"]], axis=0)        # (32, 4)
    cb1 = jnp.concatenate([raw["sb1"].T, raw["db1"].T], axis=0)    # (32, 1)
    cw2 = jnp.block([[raw["sw2"], z_hh], [z_hh, raw["dw2"]]])      # (32, 32)
    cb2 = jnp.concatenate([raw["sb2"].T, raw["db2"].T], axis=0)    # (32, 1)
    cw3 = jnp.block([[raw["sw3"], z_2h], [z_2h, raw["dw3"]]])      # (4, 32)
    cb3 = jnp.concatenate([raw["sb3"].T, raw["db3"].T], axis=0)    # (4, 1)

    return dict(w0=raw["w0"], b0=raw["b0"], w1=raw["w1"], b1=raw["b1"],
                u_sp=u_sp, g0=g0,
                cw1=cw1, cb1=cb1, cw2=cw2, cb2=cb2, cw3=cw3, cb3=cb3)


# ----------------------------- pure-JAX reference ----------------------------
def kfunction_reference(data, raw):
    x = data[:, 0:2]
    hx = 36.0 - jnp.sum(x[:, 0:1] ** 2, axis=1)                    # (B,)

    def icnn(v):
        xin = v[None, :]                                           # (1, B)
        u = jax.nn.softplus(raw["u0"])
        z = _smooth_relu(raw["w0"] @ xin + raw["b0"])
        z = _smooth_relu(raw["w1"] @ xin + raw["b1"] + u @ z)
        return z                                                   # (H, B)

    g = icnn(hx)
    g0 = icnn(jnp.zeros_like(hx))
    out1 = 1.0 / _smooth_relu(g - g0)

    def control(w1, b1, w2, b2, w3, b3):
        h1 = jax.nn.relu(data @ w1.T + b1)
        h2 = jax.nn.relu(h1 @ w2.T + b2)
        return (h2 @ w3.T + b3) * x

    s_u = control(raw["sw1"], raw["sb1"], raw["sw2"], raw["sb2"],
                  raw["sw3"], raw["sb3"])
    d_u = control(raw["dw1"], raw["db1"], raw["dw2"], raw["db2"],
                  raw["dw3"], raw["db3"])
    return out1, d_u, s_u


if __name__ == "__main__":
    key = jax.random.PRNGKey(0)
    kp_key, kd_key, kd2_key = jax.random.split(key, 3)
    raw = make_raw_params(kp_key)
    params = prepare_params(raw)

    # small test (single tile)
    B = 8
    data = jax.random.normal(kd_key, (B, 4), dtype=jnp.float32)
    out1, d_u, s_u = kfunction_forward(data, params)
    jax.block_until_ready((out1, d_u, s_u))

    r_out1, r_du, r_su = kfunction_reference(data, raw)
    np.testing.assert_allclose(np.asarray(out1), np.asarray(r_out1),
                               rtol=1e-4, atol=1e-4)
    np.testing.assert_allclose(np.asarray(d_u), np.asarray(r_du),
                               rtol=1e-5, atol=1e-5)
    np.testing.assert_allclose(np.asarray(s_u), np.asarray(r_su),
                               rtol=1e-5, atol=1e-5)
    assert out1.shape == (HIDDEN, B) and d_u.shape == (B, 2) and s_u.shape == (B, 2)

    # multi-tile test (exercises grid > 1 and batch padding)
    B2 = 260
    data2 = jax.random.normal(kd2_key, (B2, 4), dtype=jnp.float32)
    out1b, d_ub, s_ub = kfunction_forward(data2, params, tile_b=128)
    jax.block_until_ready((out1b, d_ub, s_ub))
    r_out1b, r_dub, r_sub = kfunction_reference(data2, raw)
    np.testing.assert_allclose(np.asarray(out1b), np.asarray(r_out1b),
                               rtol=1e-4, atol=1e-4)
    np.testing.assert_allclose(np.asarray(d_ub), np.asarray(r_dub),
                               rtol=1e-5, atol=1e-5)
    np.testing.assert_allclose(np.asarray(s_ub), np.asarray(r_sub),
                               rtol=1e-5, atol=1e-5)
    assert out1b.shape == (HIDDEN, B2)

    # larger batch with the new default tile selection (>= 2 grid steps)
    B3 = 4096
    data3 = jax.random.normal(kd2_key, (B3, 4), dtype=jnp.float32)
    out1c, d_uc, s_uc = kfunction_forward(data3, params)
    jax.block_until_ready((out1c, d_uc, s_uc))
    assert out1c.shape == (HIDDEN, B3) and d_uc.shape == (B3, 2)

    print("KERNEL_OK")
</pallas_src>

<mosaic_0001>
module attributes {stable_mosaic.version = 11 : i64} {
  func.func @kfunction_kernel(%arg0: i32, %arg1: memref<4x128xf32, #tpu.memory_space<vmem>>, %arg2: memref<64x1xf32, #tpu.memory_space<vmem>>, %arg3: memref<64x1xf32, #tpu.memory_space<vmem>>, %arg4: memref<64x1xf32, #tpu.memory_space<vmem>>, %arg5: memref<64x1xf32, #tpu.memory_space<vmem>>, %arg6: memref<64x64xf32, #tpu.memory_space<vmem>>, %arg7: memref<64x1xf32, #tpu.memory_space<vmem>>, %arg8: memref<32x4xf32, #tpu.memory_space<vmem>>, %arg9: memref<32x1xf32, #tpu.memory_space<vmem>>, %arg10: memref<32x32xf32, #tpu.memory_space<vmem>>, %arg11: memref<32x1xf32, #tpu.memory_space<vmem>>, %arg12: memref<4x32xf32, #tpu.memory_space<vmem>>, %arg13: memref<4x1xf32, #tpu.memory_space<vmem>>, %arg14: memref<64x128xf32, #tpu.memory_space<vmem>>, %arg15: memref<4x128xf32, #tpu.memory_space<vmem>>) attributes {dimension_semantics = [#tpu.dimension_semantics<parallel>], iteration_bounds = array<i64: 1>, scalar_prefetch = 0 : i64, scratch_operands = 0 : i64, tpu.core_type = #tpu.core_type<tc>, window_params = [{transform_indices = @transform_0, window_bounds = array<i64: 4, 128>}, {pipeline_mode = #tpu.pipeline_mode<synchronous>, transform_indices = @transform_1, window_bounds = array<i64: 64, 1>}, {pipeline_mode = #tpu.pipeline_mode<synchronous>, transform_indices = @transform_2, window_bounds = array<i64: 64, 1>}, {pipeline_mode = #tpu.pipeline_mode<synchronous>, transform_indices = @transform_3, window_bounds = array<i64: 64, 1>}, {pipeline_mode = #tpu.pipeline_mode<synchronous>, transform_indices = @transform_4, window_bounds = array<i64: 64, 1>}, {pipeline_mode = #tpu.pipeline_mode<synchronous>, transform_indices = @transform_5, window_bounds = array<i64: 64, 64>}, {pipeline_mode = #tpu.pipeline_mode<synchronous>, transform_indices = @transform_6, window_bounds = array<i64: 64, 1>}, {pipeline_mode = #tpu.pipeline_mode<synchronous>, transform_indices = @transform_7, window_bounds = array<i64: 32, 4>}, {pipeline_mode = #tpu.pipeline_mode<synchronous>, transform_indices = @transform_8, window_bounds = array<i64: 32, 1>}, {pipeline_mode = #tpu.pipeline_mode<synchronous>, transform_indices = @transform_9, window_bounds = array<i64: 32, 32>}, {pipeline_mode = #tpu.pipeline_mode<synchronous>, transform_indices = @transform_10, window_bounds = array<i64: 32, 1>}, {pipeline_mode = #tpu.pipeline_mode<synchronous>, transform_indices = @transform_11, window_bounds = array<i64: 4, 32>}, {pipeline_mode = #tpu.pipeline_mode<synchronous>, transform_indices = @transform_12, window_bounds = array<i64: 4, 1>}, {transform_indices = @transform_13, window_bounds = array<i64: 64, 128>}, {transform_indices = @transform_14, window_bounds = array<i64: 4, 128>}]} {
    %c0 = arith.constant 0 : index
    %c0_0 = arith.constant 0 : index
    %0 = vector.load %arg1[%c0, %c0_0] : memref<4x128xf32, #tpu.memory_space<vmem>>, vector<4x128xf32>
    %1 = vector.extract_strided_slice %0 {offsets = [0, 0], sizes = [1, 128], strides = [1, 1]} : vector<4x128xf32> to vector<1x128xf32>
    %2 = arith.mulf %1, %1 : vector<1x128xf32>
    %cst = arith.constant 3.600000e+01 : f32
    %3 = vector.broadcast %cst : f32 to vector<1x128xf32>
    %4 = arith.subf %3, %2 : vector<1x128xf32>
    %c0_1 = arith.constant 0 : index
    %c0_2 = arith.constant 0 : index
    %5 = vector.load %arg2[%c0_1, %c0_2] : memref<64x1xf32, #tpu.memory_space<vmem>>, vector<64x1xf32>
    %6 = vector.broadcast %5 : vector<64x1xf32> to vector<64x128xf32>
    %7 = vector.broadcast %4 : vector<1x128xf32> to vector<64x128xf32>
    %8 = arith.mulf %6, %7 : vector<64x128xf32>
    %c0_3 = arith.constant 0 : index
    %c0_4 = arith.constant 0 : index
    %9 = vector.load %arg3[%c0_3, %c0_4] : memref<64x1xf32, #tpu.memory_space<vmem>>, vector<64x1xf32>
    %10 = vector.broadcast %9 : vector<64x1xf32> to vector<64x128xf32>
    %11 = arith.addf %8, %10 : vector<64x128xf32>
    %cst_5 = arith.constant 0.000000e+00 : f32
    %12 = vector.broadcast %cst_5 : f32 to vector<64x128xf32>
    %13 = arith.maximumf %11, %12 : vector<64x128xf32>
    %14 = arith.mulf %13, %13 : vector<64x128xf32>
    %15 = arith.mulf %14, %13 : vector<64x128xf32>
    %cst_6 = arith.constant 2.000000e-01 : f32
    %16 = vector.broadcast %cst_6 : f32 to vector<64x128xf32>
    %17 = arith.mulf %16, %15 : vector<64x128xf32>
    %18 = arith.mulf %15, %13 : vector<64x128xf32>
    %19 = arith.subf %17, %18 : vector<64x128xf32>
    %cst_7 = arith.constant 5.000000e+02 : f32
    %20 = vector.broadcast %cst_7 : f32 to vector<64x128xf32>
    %21 = arith.mulf %19, %20 : vector<64x128xf32>
    %cst_8 = arith.constant 1.000000e-01 : f32
    %22 = vector.broadcast %cst_8 : f32 to vector<64x128xf32>
    %23 = arith.cmpf olt, %13, %22 : vector<64x128xf32>
    %cst_9 = arith.constant 5.000000e-02 : f32
    %24 = vector.broadcast %cst_9 : f32 to vector<64x128xf32>
    %25 = arith.subf %11, %24 : vector<64x128xf32>
    %26 = arith.select %23, %21, %25 : vector<64x128xi1>, vector<64x128xf32>
    %c0_10 = arith.constant 0 : index
    %c0_11 = arith.constant 0 : index
    %27 = vector.load %arg4[%c0_10, %c0_11] : memref<64x1xf32, #tpu.memory_space<vmem>>, vector<64x1xf32>
    %28 = vector.broadcast %27 : vector<64x1xf32> to vector<64x128xf32>
    %29 = vector.broadcast %4 : vector<1x128xf32> to vector<64x128xf32>
    %30 = arith.mulf %28, %29 : vector<64x128xf32>
    %c0_12 = arith.constant 0 : index
    %c0_13 = arith.constant 0 : index
    %31 = vector.load %arg5[%c0_12, %c0_13] : memref<64x1xf32, #tpu.memory_space<vmem>>, vector<64x1xf32>
    %32 = vector.broadcast %31 : vector<64x1xf32> to vector<64x128xf32>
    %33 = arith.addf %30, %32 : vector<64x128xf32>
    %c0_14 = arith.constant 0 : index
    %c0_15 = arith.constant 0 : index
    %34 = vector.load %arg6[%c0_14, %c0_15] : memref<64x64xf32, #tpu.memory_space<vmem>>, vector<64x64xf32>
    %cst_16 = arith.constant dense<0.000000e+00> : vector<64x128xf32>
    %35 = tpu.matmul %34, %26, %cst_16 {dimension_numbers = #tpu.dot_dimension_numbers<[1], [0], [0], [1], [0, 0, 1, 1], [], []>} : vector<64x64xf32>, vector<64x128xf32>, vector<64x128xf32> -> vector<64x128xf32>
    %36 = arith.addf %33, %35 : vector<64x128xf32>
    %cst_17 = arith.constant 0.000000e+00 : f32
    %37 = vector.broadcast %cst_17 : f32 to vector<64x128xf32>
    %38 = arith.maximumf %36, %37 : vector<64x128xf32>
    %39 = arith.mulf %38, %38 : vector<64x128xf32>
    %40 = arith.mulf %39, %38 : vector<64x128xf32>
    %cst_18 = arith.constant 2.000000e-01 : f32
    %41 = vector.broadcast %cst_18 : f32 to vector<64x128xf32>
    %42 = arith.mulf %41, %40 : vector<64x128xf32>
    %43 = arith.mulf %40, %38 : vector<64x128xf32>
    %44 = arith.subf %42, %43 : vector<64x128xf32>
    %cst_19 = arith.constant 5.000000e+02 : f32
    %45 = vector.broadcast %cst_19 : f32 to vector<64x128xf32>
    %46 = arith.mulf %44, %45 : vector<64x128xf32>
    %cst_20 = arith.constant 1.000000e-01 : f32
    %47 = vector.broadcast %cst_20 : f32 to vector<64x128xf32>
    %48 = arith.cmpf olt, %38, %47 : vector<64x128xf32>
    %cst_21 = arith.constant 5.000000e-02 : f32
    %49 = vector.broadcast %cst_21 : f32 to vector<64x128xf32>
    %50 = arith.subf %36, %49 : vector<64x128xf32>
    %51 = arith.select %48, %46, %50 : vector<64x128xi1>, vector<64x128xf32>
    %c0_22 = arith.constant 0 : index
    %c0_23 = arith.constant 0 : index
    %52 = vector.load %arg7[%c0_22, %c0_23] : memref<64x1xf32, #tpu.memory_space<vmem>>, vector<64x1xf32>
    %53 = vector.broadcast %52 : vector<64x1xf32> to vector<64x128xf32>
    %54 = arith.subf %51, %53 : vector<64x128xf32>
    %cst_24 = arith.constant 0.000000e+00 : f32
    %55 = vector.broadcast %cst_24 : f32 to vector<64x128xf32>
    %56 = arith.maximumf %54, %55 : vector<64x128xf32>
    %57 = arith.mulf %56, %56 : vector<64x128xf32>
    %58 = arith.mulf %57, %56 : vector<64x128xf32>
    %cst_25 = arith.constant 2.000000e-01 : f32
    %59 = vector.broadcast %cst_25 : f32 to vector<64x128xf32>
    %60 = arith.mulf %59, %58 : vector<64x128xf32>
    %61 = arith.mulf %58, %56 : vector<64x128xf32>
    %62 = arith.subf %60, %61 : vector<64x128xf32>
    %cst_26 = arith.constant 5.000000e+02 : f32
    %63 = vector.broadcast %cst_26 : f32 to vector<64x128xf32>
    %64 = arith.mulf %62, %63 : vector<64x128xf32>
    %cst_27 = arith.constant 1.000000e-01 : f32
    %65 = vector.broadcast %cst_27 : f32 to vector<64x128xf32>
    %66 = arith.cmpf olt, %56, %65 : vector<64x128xf32>
    %cst_28 = arith.constant 5.000000e-02 : f32
    %67 = vector.broadcast %cst_28 : f32 to vector<64x128xf32>
    %68 = arith.subf %54, %67 : vector<64x128xf32>
    %69 = arith.select %66, %64, %68 : vector<64x128xi1>, vector<64x128xf32>
    %70 = tpu.reciprocal %69 {approx = true} : vector<64x128xf32> -> vector<64x128xf32>
    %cst_29 = arith.constant 0.000000e+00 : f32
    %71 = vector.broadcast %cst_29 : f32 to vector<64x128xf32>
    %72 = arith.cmpf ogt, %69, %71 : vector<64x128xf32>
    %73 = arith.mulf %69, %70 : vector<64x128xf32>
    %cst_30 = arith.constant 2.000000e+00 : f32
    %74 = vector.broadcast %cst_30 : f32 to vector<64x128xf32>
    %75 = arith.subf %74, %73 : vector<64x128xf32>
    %76 = arith.mulf %70, %75 : vector<64x128xf32>
    %cst_31 = arith.constant 0x7F800000 : f32
    %77 = vector.broadcast %cst_31 : f32 to vector<64x128xf32>
    %78 = arith.select %72, %76, %77 : vector<64x128xi1>, vector<64x128xf32>
    %c0_32 = arith.constant 0 : index
    %c0_33 = arith.constant 0 : index
    %79 = vector.load %arg14[%c0_32, %c0_33] : memref<64x128xf32, #tpu.memory_space<vmem>>, vector<64x128xf32>
    tpu.vector_store %arg14[%c0_32, %c0_33], %78 {strides = array<i32>} : memref<64x128xf32, #tpu.memory_space<vmem>>, vector<64x128xf32>,
    %80 = vector.extract_strided_slice %0 {offsets = [0, 0], sizes = [2, 128], strides = [1, 1]} : vector<4x128xf32> to vector<2x128xf32>
    %c0_34 = arith.constant 0 : index
    %c0_35 = arith.constant 0 : index
    %81 = vector.load %arg8[%c0_34, %c0_35] : memref<32x4xf32, #tpu.memory_space<vmem>>, vector<32x4xf32>
    %cst_36 = arith.constant dense<0.000000e+00> : vector<32x128xf32>
    %82 = tpu.matmul %81, %0, %cst_36 {dimension_numbers = #tpu.dot_dimension_numbers<[1], [0], [0], [1], [0, 0, 1, 1], [], []>} : vector<32x4xf32>, vector<4x128xf32>, vector<32x128xf32> -> vector<32x128xf32>
    %c0_37 = arith.constant 0 : index
    %c0_38 = arith.constant 0 : index
    %83 = vector.load %arg9[%c0_37, %c0_38] : memref<32x1xf32, #tpu.memory_space<vmem>>, vector<32x1xf32>
    %84 = vector.broadcast %83 : vector<32x1xf32> to vector<32x128xf32>
    %85 = arith.addf %82, %84 : vector<32x128xf32>
    %cst_39 = arith.constant 0.000000e+00 : f32
    %86 = vector.broadcast %cst_39 : f32 to vector<32x128xf32>
    %87 = arith.maximumf %85, %86 : vector<32x128xf32>
    %c0_40 = arith.constant 0 : index
    %c0_41 = arith.constant 0 : index
    %88 = vector.load %arg10[%c0_40, %c0_41] : memref<32x32xf32, #tpu.memory_space<vmem>>, vector<32x32xf32>
    %cst_42 = arith.constant dense<0.000000e+00> : vector<32x128xf32>
    %89 = tpu.matmul %88, %87, %cst_42 {dimension_numbers = #tpu.dot_dimension_numbers<[1], [0], [0], [1], [0, 0, 1, 1], [], []>} : vector<32x32xf32>, vector<32x128xf32>, vector<32x128xf32> -> vector<32x128xf32>
    %c0_43 = arith.constant 0 : index
    %c0_44 = arith.constant 0 : index
    %90 = vector.load %arg11[%c0_43, %c0_44] : memref<32x1xf32, #tpu.memory_space<vmem>>, vector<32x1xf32>
    %91 = vector.broadcast %90 : vector<32x1xf32> to vector<32x128xf32>
    %92 = arith.addf %89, %91 : vector<32x128xf32>
    %cst_45 = arith.constant 0.000000e+00 : f32
    %93 = vector.broadcast %cst_45 : f32 to vector<32x128xf32>
    %94 = arith.maximumf %92, %93 : vector<32x128xf32>
    %c0_46 = arith.constant 0 : index
    %c0_47 = arith.constant 0 : index
    %95 = vector.load %arg12[%c0_46, %c0_47] : memref<4x32xf32, #tpu.memory_space<vmem>>, vector<4x32xf32>
    %cst_48 = arith.constant dense<0.000000e+00> : vector<4x128xf32>
    %96 = tpu.matmul %95, %94, %cst_48 {dimension_numbers = #tpu.dot_dimension_numbers<[1], [0], [0], [1], [0, 0, 1, 1], [], []>} : vector<4x32xf32>, vector<32x128xf32>, vector<4x128xf32> -> vector<4x128xf32>
    %c0_49 = arith.constant 0 : index
    %c0_50 = arith.constant 0 : index
    %97 = vector.load %arg13[%c0_49, %c0_50] : memref<4x1xf32, #tpu.memory_space<vmem>>, vector<4x1xf32>
    %98 = vector.broadcast %97 : vector<4x1xf32> to vector<4x128xf32>
    %99 = arith.addf %96, %98 : vector<4x128xf32>
    %100 = tpu.concatenate %80, %80 in 0 : vector<2x128xf32>, vector<2x128xf32> -> vector<4x128xf32>
    %101 = arith.mulf %99, %100 : vector<4x128xf32>
    %c0_51 = arith.constant 0 : index
    %c0_52 = arith.constant 0 : index
    %102 = vector.load %arg15[%c0_51, %c0_52] : memref<4x128xf32, #tpu.memory_space<vmem>>, vector<4x128xf32>
    tpu.vector_store %arg15[%c0_51, %c0_52], %101 {strides = array<i32>} : memref<4x128xf32, #tpu.memory_space<vmem>>, vector<4x128xf32>,
    return
  }
  func.func @transform_0(%arg0: i32) -> (i32, i32) {
    %c0_i32 = arith.constant 0 : i32
    %c0_i32_0 = arith.constant 0 : i32
    return %c0_i32, %arg0 : i32, i32
  }
  func.func @transform_1(%arg0: i32) -> (i32, i32) {
    %c0_i32 = arith.constant 0 : i32
    %c0_i32_0 = arith.constant 0 : i32
    %c0_i32_1 = arith.constant 0 : i32
    return %c0_i32, %c0_i32_0 : i32, i32
  }
  func.func @transform_2(%arg0: i32) -> (i32, i32) {
    %c0_i32 = arith.constant 0 : i32
    %c0_i32_0 = arith.constant 0 : i32
    %c0_i32_1 = arith.constant 0 : i32
    return %c0_i32, %c0_i32_0 : i32, i32
  }
  func.func @transform_3(%arg0: i32) -> (i32, i32) {
    %c0_i32 = arith.constant 0 : i32
    %c0_i32_0 = arith.constant 0 : i32
    %c0_i32_1 = arith.constant 0 : i32
    return %c0_i32, %c0_i32_0 : i32, i32
  }
  func.func @transform_4(%arg0: i32) -> (i32, i32) {
    %c0_i32 = arith.constant 0 : i32
    %c0_i32_0 = arith.constant 0 : i32
    %c0_i32_1 = arith.constant 0 : i32
    return %c0_i32, %c0_i32_0 : i32, i32
  }
  func.func @transform_5(%arg0: i32) -> (i32, i32) {
    %c0_i32 = arith.constant 0 : i32
    %c0_i32_0 = arith.constant 0 : i32
    %c0_i32_1 = arith.constant 0 : i32
    return %c0_i32, %c0_i32_0 : i32, i32
  }
  func.func @transform_6(%arg0: i32) -> (i32, i32) {
    %c0_i32 = arith.constant 0 : i32
    %c0_i32_0 = arith.constant 0 : i32
    %c0_i32_1 = arith.constant 0 : i32
    return %c0_i32, %c0_i32_0 : i32, i32
  }
  func.func @transform_7(%arg0: i32) -> (i32, i32) {
    %c0_i32 = arith.constant 0 : i32
    %c0_i32_0 = arith.constant 0 : i32
    %c0_i32_1 = arith.constant 0 : i32
    return %c0_i32, %c0_i32_0 : i32, i32
  }
  func.func @transform_8(%arg0: i32) -> (i32, i32) {
    %c0_i32 = arith.constant 0 : i32
    %c0_i32_0 = arith.constant 0 : i32
    %c0_i32_1 = arith.constant 0 : i32
    return %c0_i32, %c0_i32_0 : i32, i32
  }
  func.func @transform_9(%arg0: i32) -> (i32, i32) {
    %c0_i32 = arith.constant 0 : i32
    %c0_i32_0 = arith.constant 0 : i32
    %c0_i32_1 = arith.constant 0 : i32
    return %c0_i32, %c0_i32_0 : i32, i32
  }
  func.func @transform_10(%arg0: i32) -> (i32, i32) {
    %c0_i32 = arith.constant 0 : i32
    %c0_i32_0 = arith.constant 0 : i32
    %c0_i32_1 = arith.constant 0 : i32
    return %c0_i32, %c0_i32_0 : i32, i32
  }
  func.func @transform_11(%arg0: i32) -> (i32, i32) {
    %c0_i32 = arith.constant 0 : i32
    %c0_i32_0 = arith.constant 0 : i32
    %c0_i32_1 = arith.constant 0 : i32
    return %c0_i32, %c0_i32_0 : i32, i32
  }
  func.func @transform_12(%arg0: i32) -> (i32, i32) {
    %c0_i32 = arith.constant 0 : i32
    %c0_i32_0 = arith.constant 0 : i32
    %c0_i32_1 = arith.constant 0 : i32
    return %c0_i32, %c0_i32_0 : i32, i32
  }
  func.func @transform_13(%arg0: i32) -> (i32, i32) {
    %c0_i32 = arith.constant 0 : i32
    %c0_i32_0 = arith.constant 0 : i32
    return %c0_i32, %arg0 : i32, i32
  }
  func.func @transform_14(%arg0: i32) -> (i32, i32) {
    %c0_i32 = arith.constant 0 : i32
    %c0_i32_0 = arith.constant 0 : i32
    return %c0_i32, %arg0 : i32, i32
  }
}

</mosaic_0001>

<llo_original>
// kernel: tpu_custom_call.1
$region0: #{tpu_custom_call.1}
  #allocation0 [shape = 'u32[]', space=smem, size = 0x4, offset = 0x4, fixed_abs, tag = 'smem constant byte address 0x4 - core index']
  #allocation1 [shape = 'u32[144,128]{1,0:T(1,128)}', space=vmem, size = 0x12000, scoped, tag = 'internal scratch']
  %s0 = inlined_call_operand.vmem [shape: f32[4,128], index: 0, kind: input, shape index: {}]
  %s1 = inlined_call_operand.vmem [shape: f32[64,1], index: 1, kind: input, shape index: {}]
  %s2 = inlined_call_operand.vmem [shape: f32[64,1], index: 2, kind: input, shape index: {}]
  %s3 = inlined_call_operand.vmem [shape: f32[64,1], index: 3, kind: input, shape index: {}]
  %s4 = inlined_call_operand.vmem [shape: f32[64,1], index: 4, kind: input, shape index: {}]
  %s5 = inlined_call_operand.vmem [shape: f32[64,64], index: 5, kind: input, shape index: {}]
  %s6 = inlined_call_operand.vmem [shape: f32[64,1], index: 6, kind: input, shape index: {}]
  %s7 = inlined_call_operand.vmem [shape: f32[32,4], index: 7, kind: input, shape index: {}]
  %s8 = inlined_call_operand.vmem [shape: f32[32,1], index: 8, kind: input, shape index: {}]
  %s9 = inlined_call_operand.vmem [shape: f32[32,32], index: 9, kind: input, shape index: {}]
  %s10 = inlined_call_operand.vmem [shape: f32[32,1], index: 10, kind: input, shape index: {}]
  %s11 = inlined_call_operand.vmem [shape: f32[4,32], index: 11, kind: input, shape index: {}]
  %s12 = inlined_call_operand.vmem [shape: f32[4,1], index: 12, kind: input, shape index: {}]
  %s13 = inlined_call_operand.hbm [shape: f32[64,128], index: 13, kind: output, shape index: {0}]
  %s14 = inlined_call_operand.hbm [shape: f32[4,128], index: 14, kind: output, shape index: {1}]
  %15 = xla_tuple %s13, %s14
  %s16 = sld [smem:[#allocation0]]
  $region70: #{tpu_custom_call.1} parent=0
    _
  %s18 = ssub.s32 1, %s16
  %s19 = scalar_select 0, %s18, %s16
  $region1: #{tpu_custom_call.1} parent=0
    #allocation2 [shape = 'u8[32768]{0}', space=vmem, size = 0x8000, scoped, tag = 'output window, operand 0, single buffered']
    #allocation3 [shape = 's32[1]{0}', space=sflag, size = 0x4, scoped, tag = 'scoped memory for tpu_custom_call.1']
    #allocation4 [shape = 'u8[2048]{0}', space=vmem, size = 0x800, scoped, tag = 'output window, operand 1, single buffered']
    #allocation5 [shape = 's32[1]{0}', space=sflag, size = 0x4, scoped, tag = 'scoped memory for tpu_custom_call.1']
    %20 = vsyncpa [#allocation3], 0
    %21 = vsyncpa [#allocation5], 0
    // Predicated region
    $region2: #{tpu_custom_call.1} parent=1 // pred_check
      _
    $region3: #{tpu_custom_call.1} parent=1 // pred_check_branch
      %23 = sbr.rel (0) target = $region5
    $region4: #{tpu_custom_call.1} parent=1 // pred_region
      _
    $region5: #{tpu_custom_call.1} parent=1 // pred_fallthru
      _
    // Predicated region
    $region6: #{tpu_custom_call.1} parent=1 // pred_check
      _
    $region7: #{tpu_custom_call.1} parent=1 // pred_check_branch
      %25 = sbr.rel (0) target = $region9
    $region8: #{tpu_custom_call.1} parent=1 // pred_region
      _
    $region9: #{tpu_custom_call.1} parent=1 // pred_fallthru
      _
    // Predicated region
    $region10: #{tpu_custom_call.1} parent=1 // pred_check
      _
    $region11: #{tpu_custom_call.1} parent=1 // pred_check_branch
      %27 = sbr.rel (0) target = $region13
    $region12: #{tpu_custom_call.1} parent=1 // pred_region
      _
    $region13: #{tpu_custom_call.1} parent=1 // pred_fallthru
      _
    // Predicated region
    $region14: #{tpu_custom_call.1} parent=1 // pred_check
      _
    $region15: #{tpu_custom_call.1} parent=1 // pred_check_branch
      %29 = sbr.rel (0) target = $region17
    $region16: #{tpu_custom_call.1} parent=1 // pred_region
      _
    $region17: #{tpu_custom_call.1} parent=1 // pred_fallthru
      _
    // Predicated region
    $region18: #{tpu_custom_call.1} parent=1 // pred_check
      _
    $region19: #{tpu_custom_call.1} parent=1 // pred_check_branch
      %31 = sbr.rel (0) target = $region21
    $region20: #{tpu_custom_call.1} parent=1 // pred_region
      _
    $region21: #{tpu_custom_call.1} parent=1 // pred_fallthru
      _
    // Predicated region
    $region22: #{tpu_custom_call.1} parent=1 // pred_check
      _
    $region23: #{tpu_custom_call.1} parent=1 // pred_check_branch
      %33 = sbr.rel (0) target = $region25
    $region24: #{tpu_custom_call.1} parent=1 // pred_region
      _
    $region25: #{tpu_custom_call.1} parent=1 // pred_fallthru
      _
    // Predicated region
    $region26: #{tpu_custom_call.1} parent=1 // pred_check
      _
    $region27: #{tpu_custom_call.1} parent=1 // pred_check_branch
      %35 = sbr.rel (0) target = $region29
    $region28: #{tpu_custom_call.1} parent=1 // pred_region
      _
    $region29: #{tpu_custom_call.1} parent=1 // pred_fallthru
      _
    // Predicated region
    $region30: #{tpu_custom_call.1} parent=1 // pred_check
      _
    $region31: #{tpu_custom_call.1} parent=1 // pred_check_branch
      %37 = sbr.rel (0) target = $region33
    $region32: #{tpu_custom_call.1} parent=1 // pred_region
      _
    $region33: #{tpu_custom_call.1} parent=1 // pred_fallthru
      _
    // Predicated region
    $region34: #{tpu_custom_call.1} parent=1 // pred_check
      _
    $region35: #{tpu_custom_call.1} parent=1 // pred_check_branch
      %39 = sbr.rel (0) target = $region37
    $region36: #{tpu_custom_call.1} parent=1 // pred_region
      _
    $region37: #{tpu_custom_call.1} parent=1 // pred_fallthru
      _
    // Predicated region
    $region38: #{tpu_custom_call.1} parent=1 // pred_check
      _
    $region39: #{tpu_custom_call.1} parent=1 // pred_check_branch
      %41 = sbr.rel (0) target = $region41
    $region40: #{tpu_custom_call.1} parent=1 // pred_region
      _
    $region41: #{tpu_custom_call.1} parent=1 // pred_fallthru
      _
    // Predicated region
    $region42: #{tpu_custom_call.1} parent=1 // pred_check
      _
    $region43: #{tpu_custom_call.1} parent=1 // pred_check_branch
      %43 = sbr.rel (0) target = $region45
    $region44: #{tpu_custom_call.1} parent=1 // pred_region
      _
    $region45: #{tpu_custom_call.1} parent=1 // pred_fallthru
      _
    // Predicated region
    $region46: #{tpu_custom_call.1} parent=1 // pred_check
      _
    $region47: #{tpu_custom_call.1} parent=1 // pred_check_branch
      %45 = sbr.rel (0) target = $region49
    $region48: #{tpu_custom_call.1} parent=1 // pred_region
      _
    $region49: #{tpu_custom_call.1} parent=1 // pred_fallthru
      _
    // Predicated region
    $region50: #{tpu_custom_call.1} parent=1 // pred_check
      _
    $region51: #{tpu_custom_call.1} parent=1 // pred_check_branch
      %47 = sbr.rel (0) target = $region53
    $region52: #{tpu_custom_call.1} parent=1 // pred_region
      _
    $region53: #{tpu_custom_call.1} parent=1 // pred_fallthru
      _
    %v48 = vld [vmem:[%s0] sm:$0xf]
    %v49 = vmul.f32 %v48, %v48
    %v50 = vsub.f32 36.0, %v49
    %v51 = vld [vmem:[%s1] sm:$0xff]
    %v52 = vld [vmem:[%s1 + $0x8] sm:$0xff]
    %v53 = vld [vmem:[%s1 + $0x10] sm:$0xff]
    %v54 = vld [vmem:[%s1 + $0x18] sm:$0xff]
    %v55 = vld [vmem:[%s1 + $0x20] sm:$0xff]
    %v56 = vld [vmem:[%s1 + $0x28] sm:$0xff]
    %v57 = vld [vmem:[%s1 + $0x30] sm:$0xff]
    %v58 = vld [vmem:[%s1 + $0x38] sm:$0xff]
    %60 = vset.pattern.permute.xlu0 0
    %61 = vperm.xlu0 %60, %v51
    %v62 = vpop.permute.xlu0 %61
    %65 = vset.pattern.permute.xlu0 0
    %66 = vperm.xlu0 %65, %v52
    %v67 = vpop.permute.xlu0 %66
    %70 = vset.pattern.permute.xlu0 0
    %71 = vperm.xlu0 %70, %v53
    %v72 = vpop.permute.xlu0 %71
    %75 = vset.pattern.permute.xlu0 0
    %76 = vperm.xlu0 %75, %v54
    %v77 = vpop.permute.xlu0 %76
    %80 = vset.pattern.permute.xlu0 0
    %81 = vperm.xlu0 %80, %v55
    %v82 = vpop.permute.xlu0 %81
    %85 = vset.pattern.permute.xlu0 0
    %86 = vperm.xlu0 %85, %v56
    %v87 = vpop.permute.xlu0 %86
    %90 = vset.pattern.permute.xlu0 0
    %91 = vperm.xlu0 %90, %v57
    %v92 = vpop.permute.xlu0 %91
    %95 = vset.pattern.permute.xlu0 0
    %96 = vperm.xlu0 %95, %v58
    %v97 = vpop.permute.xlu0 %96
    %v99 = vlaneseq
    %v100 = vshrl.u32 %v99, 7
    %v101 = vsub.s32 0, %v100
    %v102 = vrot.slane %v50, %v101
    %v103 = vmul.f32 %v62, %v102
    %v104 = vmul.f32 %v67, %v102
    %v105 = vmul.f32 %v72, %v102
    %v106 = vmul.f32 %v77, %v102
    %v107 = vmul.f32 %v82, %v102
    %v108 = vmul.f32 %v87, %v102
    %v109 = vmul.f32 %v92, %v102
    %v110 = vmul.f32 %v97, %v102
    %v111 = vld [vmem:[%s2] sm:$0xff]
    %v112 = vld [vmem:[%s2 + $0x8] sm:$0xff]
    %v113 = vld [vmem:[%s2 + $0x10] sm:$0xff]
    %v114 = vld [vmem:[%s2 + $0x18] sm:$0xff]
    %v115 = vld [vmem:[%s2 + $0x20] sm:$0xff]
    %v116 = vld [vmem:[%s2 + $0x28] sm:$0xff]
    %v117 = vld [vmem:[%s2 + $0x30] sm:$0xff]
    %v118 = vld [vmem:[%s2 + $0x38] sm:$0xff]
    %120 = vset.pattern.permute.xlu0 0
    %121 = vperm.xlu0 %120, %v111
    %v122 = vpop.permute.xlu0 %121
    %125 = vset.pattern.permute.xlu0 0
    %126 = vperm.xlu0 %125, %v112
    %v127 = vpop.permute.xlu0 %126
    %130 = vset.pattern.permute.xlu0 0
    %131 = vperm.xlu0 %130, %v113
    %v132 = vpop.permute.xlu0 %131
    %135 = vset.pattern.permute.xlu0 0
    %136 = vperm.xlu0 %135, %v114
    %v137 = vpop.permute.xlu0 %136
    %140 = vset.pattern.permute.xlu0 0
    %141 = vperm.xlu0 %140, %v115
    %v142 = vpop.permute.xlu0 %141
    %145 = vset.pattern.permute.xlu0 0
    %146 = vperm.xlu0 %145, %v116
    %v147 = vpop.permute.xlu0 %146
    %150 = vset.pattern.permute.xlu0 0
    %151 = vperm.xlu0 %150, %v117
    %v152 = vpop.permute.xlu0 %151
    %155 = vset.pattern.permute.xlu0 0
    %156 = vperm.xlu0 %155, %v118
    %v157 = vpop.permute.xlu0 %156
    %v159 = vadd.f32 %v103, %v122
    %v160 = vadd.f32 %v104, %v127
    %v161 = vadd.f32 %v105, %v132
    %v162 = vadd.f32 %v106, %v137
    %v163 = vadd.f32 %v107, %v142
    %v164 = vadd.f32 %v108, %v147
    %v165 = vadd.f32 %v109, %v152
    %v166 = vadd.f32 %v110, %v157
    %v167 = vmax.f32 %v159, 0.0
    %v168 = vmax.f32 %v160, 0.0
    %v169 = vmax.f32 %v161, 0.0
    %v170 = vmax.f32 %v162, 0.0
    %v171 = vmax.f32 %v163, 0.0
    %v172 = vmax.f32 %v164, 0.0
    %v173 = vmax.f32 %v165, 0.0
    %v174 = vmax.f32 %v166, 0.0
    %v175 = vmul.f32 %v167, %v167
    %v176 = vmul.f32 %v168, %v168
    %v177 = vmul.f32 %v169, %v169
    %v178 = vmul.f32 %v170, %v170
    %v179 = vmul.f32 %v171, %v171
    %v180 = vmul.f32 %v172, %v172
    %v181 = vmul.f32 %v173, %v173
    %v182 = vmul.f32 %v174, %v174
    %v183 = vmul.f32 %v175, %v167
    %v184 = vmul.f32 %v176, %v168
    %v185 = vmul.f32 %v177, %v169
    %v186 = vmul.f32 %v178, %v170
    %v187 = vmul.f32 %v179, %v171
    %v188 = vmul.f32 %v180, %v172
    %v189 = vmul.f32 %v181, %v173
    %v190 = vmul.f32 %v182, %v174
    %v191 = vmul.f32 %v183, 0.2
    %v192 = vmul.f32 %v184, 0.2
    %v193 = vmul.f32 %v185, 0.2
    %v194 = vmul.f32 %v186, 0.2
    %v195 = vmul.f32 %v187, 0.2
    %v196 = vmul.f32 %v188, 0.2
    %v197 = vmul.f32 %v189, 0.2
    %v198 = vmul.f32 %v190, 0.2
    %v199 = vmul.f32 %v183, %v167
    %v200 = vmul.f32 %v184, %v168
    %v201 = vmul.f32 %v185, %v169
    %v202 = vmul.f32 %v186, %v170
    %v203 = vmul.f32 %v187, %v171
    %v204 = vmul.f32 %v188, %v172
    %v205 = vmul.f32 %v189, %v173
    %v206 = vmul.f32 %v190, %v174
    %v207 = vsub.f32 %v191, %v199
    %v208 = vsub.f32 %v192, %v200
    %v209 = vsub.f32 %v193, %v201
    %v210 = vsub.f32 %v194, %v202
    %v211 = vsub.f32 %v195, %v203
    %v212 = vsub.f32 %v196, %v204
    %v213 = vsub.f32 %v197, %v205
    %v214 = vsub.f32 %v198, %v206
    %v215 = vmul.f32 %v207, 500.0
    %v216 = vmul.f32 %v208, 500.0
    %v217 = vmul.f32 %v209, 500.0
    %v218 = vmul.f32 %v210, 500.0
    %v219 = vmul.f32 %v211, 500.0
    %v220 = vmul.f32 %v212, 500.0
    %v221 = vmul.f32 %v213, 500.0
    %v222 = vmul.f32 %v214, 500.0
    %vm223 = vcmp.lt.f32.partialorder %v167, 0.1
    %vm224 = vcmp.lt.f32.partialorder %v168, 0.1
    %vm225 = vcmp.lt.f32.partialorder %v169, 0.1
    %vm226 = vcmp.lt.f32.partialorder %v170, 0.1
    %vm227 = vcmp.lt.f32.partialorder %v171, 0.1
    %vm228 = vcmp.lt.f32.partialorder %v172, 0.1
    %vm229 = vcmp.lt.f32.partialorder %v173, 0.1
    %vm230 = vcmp.lt.f32.partialorder %v174, 0.1
    %v231 = vsub.f32 %v159, 0.05
    %v232 = vsub.f32 %v160, 0.05
    %v233 = vsub.f32 %v161, 0.05
    %v234 = vsub.f32 %v162, 0.05
    %v235 = vsub.f32 %v163, 0.05
    %v236 = vsub.f32 %v164, 0.05
    %v237 = vsub.f32 %v165, 0.05
    %v238 = vsub.f32 %v166, 0.05
    %v239 = vsel %vm223, %v215, %v231
    %v240 = vsel %vm224, %v216, %v232
    %v241 = vsel %vm225, %v217, %v233
    %v242 = vsel %vm226, %v218, %v234
    %v243 = vsel %vm227, %v219, %v235
    %v244 = vsel %vm228, %v220, %v236
    %v245 = vsel %vm229, %v221, %v237
    %v246 = vsel %vm230, %v222, %v238
    %v247 = vld [vmem:[%s3] sm:$0xff]
    %v248 = vld [vmem:[%s3 + $0x8] sm:$0xff]
    %v249 = vld [vmem:[%s3 + $0x10] sm:$0xff]
    %v250 = vld [vmem:[%s3 + $0x18] sm:$0xff]
    %v251 = vld [vmem:[%s3 + $0x20] sm:$0xff]
    %v252 = vld [vmem:[%s3 + $0x28] sm:$0xff]
    %v253 = vld [vmem:[%s3 + $0x30] sm:$0xff]
    %v254 = vld [vmem:[%s3 + $0x38] sm:$0xff]
    %256 = vset.pattern.permute.xlu0 0
    %257 = vperm.xlu0 %256, %v247
    %v258 = vpop.permute.xlu0 %257
    %261 = vset.pattern.permute.xlu0 0
    %262 = vperm.xlu0 %261, %v248
    %v263 = vpop.permute.xlu0 %262
    %266 = vset.pattern.permute.xlu0 0
    %267 = vperm.xlu0 %266, %v249
    %v268 = vpop.permute.xlu0 %267
    %271 = vset.pattern.permute.xlu0 0
    %272 = vperm.xlu0 %271, %v250
    %v273 = vpop.permute.xlu0 %272
    %276 = vset.pattern.permute.xlu0 0
    %277 = vperm.xlu0 %276, %v251
    %v278 = vpop.permute.xlu0 %277
    %281 = vset.pattern.permute.xlu0 0
    %282 = vperm.xlu0 %281, %v252
    %v283 = vpop.permute.xlu0 %282
    %286 = vset.pattern.permute.xlu0 0
    %287 = vperm.xlu0 %286, %v253
    %v288 = vpop.permute.xlu0 %287
    %291 = vset.pattern.permute.xlu0 0
    %292 = vperm.xlu0 %291, %v254
    %v293 = vpop.permute.xlu0 %292
    %v295 = vmul.f32 %v258, %v102
    %v296 = vmul.f32 %v263, %v102
    %v297 = vmul.f32 %v268, %v102
    %v298 = vmul.f32 %v273, %v102
    %v299 = vmul.f32 %v278, %v102
    %v300 = vmul.f32 %v283, %v102
    %v301 = vmul.f32 %v288, %v102
    %v302 = vmul.f32 %v293, %v102
    %v303 = vld [vmem:[%s4] sm:$0xff]
    %v304 = vld [vmem:[%s4 + $0x8] sm:$0xff]
    %v305 = vld [vmem:[%s4 + $0x10] sm:$0xff]
    %v306 = vld [vmem:[%s4 + $0x18] sm:$0xff]
    %v307 = vld [vmem:[%s4 + $0x20] sm:$0xff]
    %v308 = vld [vmem:[%s4 + $0x28] sm:$0xff]
    %v309 = vld [vmem:[%s4 + $0x30] sm:$0xff]
    %v310 = vld [vmem:[%s4 + $0x38] sm:$0xff]
    %312 = vset.pattern.permute.xlu0 0
    %313 = vperm.xlu0 %312, %v303
    %v314 = vpop.permute.xlu0 %313
    %317 = vset.pattern.permute.xlu0 0
    %318 = vperm.xlu0 %317, %v304
    %v319 = vpop.permute.xlu0 %318
    %322 = vset.pattern.permute.xlu0 0
    %323 = vperm.xlu0 %322, %v305
    %v324 = vpop.permute.xlu0 %323
    %327 = vset.pattern.permute.xlu0 0
    %328 = vperm.xlu0 %327, %v306
    %v329 = vpop.permute.xlu0 %328
    %332 = vset.pattern.permute.xlu0 0
    %333 = vperm.xlu0 %332, %v307
    %v334 = vpop.permute.xlu0 %333
    %337 = vset.pattern.permute.xlu0 0
    %338 = vperm.xlu0 %337, %v308
    %v339 = vpop.permute.xlu0 %338
    %342 = vset.pattern.permute.xlu0 0
    %343 = vperm.xlu0 %342, %v309
    %v344 = vpop.permute.xlu0 %343
    %347 = vset.pattern.permute.xlu0 0
    %348 = vperm.xlu0 %347, %v310
    %v349 = vpop.permute.xlu0 %348
    %v351 = vadd.f32 %v295, %v314
    %v352 = vadd.f32 %v296, %v319
    %v353 = vadd.f32 %v297, %v324
    %v354 = vadd.f32 %v298, %v329
    %v355 = vadd.f32 %v299, %v334
    %v356 = vadd.f32 %v300, %v339
    %v357 = vadd.f32 %v301, %v344
    %v358 = vadd.f32 %v302, %v349
    %v359 = vld [vmem:[%s5] sm:$0xff]
    %v360 = vld [vmem:[%s5 + $0x8] sm:$0xff]
    %v361 = vld [vmem:[%s5 + $0x10] sm:$0xff]
    %v362 = vld [vmem:[%s5 + $0x18] sm:$0xff]
    %v363 = vld [vmem:[%s5 + $0x20] sm:$0xff]
    %v364 = vld [vmem:[%s5 + $0x28] sm:$0xff]
    %v365 = vld [vmem:[%s5 + $0x30] sm:$0xff]
    %v366 = vld [vmem:[%s5 + $0x38] sm:$0xff]
    %vm367 = vcmask 523264
    %v369 = vsel %vm367, %v359, 0
    %v372 = vsel %vm367, %v360, 0
    %v375 = vsel %vm367, %v361, 0
    %v378 = vsel %vm367, %v362, 0
    %v381 = vsel %vm367, %v363, 0
    %v384 = vsel %vm367, %v364, 0
    %v387 = vsel %vm367, %v365, 0
    %v390 = vsel %vm367, %v366, 0
    %392 = vmatprep.subr.mxu0 0.0
    %393 = vmatpush1.msra.mxu0 %v239
    %394 = vmatprep.subr.mxu0 0.0
    %395 = vmatpush1.msra.mxu0 %v240
    %396 = vmatprep.subr.mxu0 0.0
    %397 = vmatpush1.msra.mxu0 %v241
    %398 = vmatprep.subr.mxu0 0.0
    %399 = vmatpush1.msra.mxu0 %v242
    %400 = vmatprep.subr.mxu0 0.0
    %401 = vmatpush1.msra.mxu0 %v243
    %402 = vmatprep.subr.mxu0 0.0
    %403 = vmatpush1.msra.mxu0 %v244
    %404 = vmatprep.subr.mxu0 0.0
    %405 = vmatpush1.msra.mxu0 %v245
    %406 = vmatprep.subr.mxu0 0.0
    %407 = vmatpush1.msra.mxu0 %v246
    %408 = vmatprep.subr.mxu0 0.0
    %409 = vmatpush1.msra.mxu0 0.0
    %410 = vmatprep.subr.mxu0 0.0
    %411 = vmatpush1.msra.mxu0 0.0
    %412 = vmatprep.subr.mxu0 0.0
    %413 = vmatpush1.msra.mxu0 0.0
    %414 = vmatprep.subr.mxu0 0.0
    %415 = vmatpush1.msra.mxu0 0.0
    %416 = vmatprep.subr.mxu0 0.0
    %417 = vmatpush1.msra.mxu0 0.0
    %418 = vmatprep.subr.mxu0 0.0
    %419 = vmatpush1.msra.mxu0 0.0
    %420 = vmatprep.subr.mxu0 0.0
    %421 = vmatpush1.msra.mxu0 0.0
    %422 = vmatprep.subr.mxu0 0.0
    %423 = vmatpush1.msra.mxu0 0.0
    %424 = vmatprep.subr.mxu0 0.0
    %425 = vmatpush1.msra.mxu0 0.0
    %426 = vmatprep.subr.mxu0 0.0
    %427 = vmatpush1.msra.mxu0 0.0
    %428 = vmatprep.subr.mxu0 0.0
    %429 = vmatpush1.msra.mxu0 0.0
    %430 = vmatprep.subr.mxu0 0.0
    %431 = vmatpush1.msra.mxu0 0.0
    %432 = vmatprep.subr.mxu0 0.0
    %433 = vmatpush1.msra.mxu0 0.0
    %434 = vmatprep.subr.mxu0 0.0
    %435 = vmatpush1.msra.mxu0 0.0
    %436 = vmatprep.subr.mxu0 0.0
    %437 = vmatpush1.msra.mxu0 0.0
    %438 = vmatprep.subr.mxu0 0.0
    %439 = vmatpush1.msra.mxu0 0.0
    %440 = vmatprep.subr.mxu0 0.0
    %441 = vmatpush1.msra.mxu0 0.0
    %442 = vmatprep.subr.mxu0 0.0
    %443 = vmatpush1.msra.mxu0 0.0
    %444 = vmatprep.subr.mxu0 0.0
    %445 = vmatpush1.msra.mxu0 0.0
    %446 = vmatprep.subr.mxu0 0.0
    %447 = vmatpush1.msra.mxu0 0.0
    %448 = vmatprep.subr.mxu0 0.0
    %449 = vmatpush1.msra.mxu0 0.0
    %450 = vmatprep.subr.mxu0 0.0
    %451 = vmatpush1.msra.mxu0 0.0
    %452 = vmatprep.subr.mxu0 0.0
    %453 = vmatpush1.msra.mxu0 0.0
    %454 = vmatprep.subr.mxu0 0.0
    %455 = vmatpush1.msra.mxu0 0.0
    %456 = vmatprep.mubr.f32.mxu0 0.0
    %457 = vmatmul.mubr.f32.gmra.mrb[0].mxu0 %v369
    %v458 = vpop.f32.mrb[0].mxu0
    %v459 = vadd.f32 0.0, %v458
    %v460 = vpop.f32.mrb[0].mxu0
    %461 = vmatprep.mubr.f32.mxu0 0.0
    %462 = vmatmul.mubr.f32.gmra.mrb[0].mxu0 %v372
    %v463 = vpop.f32.mrb[0].mxu0
    %v464 = vadd.f32 0.0, %v463
    %v465 = vpop.f32.mrb[0].mxu0
    %466 = vmatprep.mubr.f32.mxu0 0.0
    %467 = vmatmul.mubr.f32.gmra.mrb[0].mxu0 %v375
    %v468 = vpop.f32.mrb[0].mxu0
    %v469 = vadd.f32 0.0, %v468
    %v470 = vpop.f32.mrb[0].mxu0
    %471 = vmatprep.mubr.f32.mxu0 0.0
    %472 = vmatmul.mubr.f32.gmra.mrb[0].mxu0 %v378
    %v473 = vpop.f32.mrb[0].mxu0
    %v474 = vadd.f32 0.0, %v473
    %v475 = vpop.f32.mrb[0].mxu0
    %476 = vmatprep.mubr.f32.mxu0 0.0
    %477 = vmatmul.mubr.f32.gmra.mrb[0].mxu0 %v381
    %v478 = vpop.f32.mrb[0].mxu0
    %v479 = vadd.f32 0.0, %v478
    %v480 = vpop.f32.mrb[0].mxu0
    %481 = vmatprep.mubr.f32.mxu0 0.0
    %482 = vmatmul.mubr.f32.gmra.mrb[0].mxu0 %v384
    %v483 = vpop.f32.mrb[0].mxu0
    %v484 = vadd.f32 0.0, %v483
    %v485 = vpop.f32.mrb[0].mxu0
    %486 = vmatprep.mubr.f32.mxu0 0.0
    %487 = vmatmul.mubr.f32.gmra.mrb[0].mxu0 %v387
    %v488 = vpop.f32.mrb[0].mxu0
    %v489 = vadd.f32 0.0, %v488
    %v490 = vpop.f32.mrb[0].mxu0
    %491 = vmatprep.mubr.f32.mxu0 0.0
    %492 = vmatmul.mubr.f32.gmra.mrb[0].mxu0 %v390
    %v493 = vpop.f32.mrb[0].mxu0
    %v494 = vadd.f32 0.0, %v493
    %v495 = vpop.f32.mrb[0].mxu0
    %496 = vdwg.mxu0
    %v497 = vadd.f32 %v351, %v459
    %v498 = vadd.f32 %v352, %v464
    %v499 = vadd.f32 %v353, %v469
    %v500 = vadd.f32 %v354, %v474
    %v501 = vadd.f32 %v355, %v479
    %v502 = vadd.f32 %v356, %v484
    %v503 = vadd.f32 %v357, %v489
    %v504 = vadd.f32 %v358, %v494
    %v505 = vmax.f32 %v497, 0.0
    %v506 = vmax.f32 %v498, 0.0
    %v507 = vmax.f32 %v499, 0.0
    %v508 = vmax.f32 %v500, 0.0
    %v509 = vmax.f32 %v501, 0.0
    %v510 = vmax.f32 %v502, 0.0
    %v511 = vmax.f32 %v503, 0.0
    %v512 = vmax.f32 %v504, 0.0
    %v513 = vmul.f32 %v505, %v505
    %v514 = vmul.f32 %v506, %v506
    %v515 = vmul.f32 %v507, %v507
    %v516 = vmul.f32 %v508, %v508
    %v517 = vmul.f32 %v509, %v509
    %v518 = vmul.f32 %v510, %v510
    %v519 = vmul.f32 %v511, %v511
    %v520 = vmul.f32 %v512, %v512
    %v521 = vmul.f32 %v513, %v505
    %v522 = vmul.f32 %v514, %v506
    %v523 = vmul.f32 %v515, %v507
    %v524 = vmul.f32 %v516, %v508
    %v525 = vmul.f32 %v517, %v509
    %v526 = vmul.f32 %v518, %v510
    %v527 = vmul.f32 %v519, %v511
    %v528 = vmul.f32 %v520, %v512
    %v529 = vmul.f32 %v521, 0.2
    %v530 = vmul.f32 %v522, 0.2
    %v531 = vmul.f32 %v523, 0.2
    %v532 = vmul.f32 %v524, 0.2
    %v533 = vmul.f32 %v525, 0.2
    %v534 = vmul.f32 %v526, 0.2
    %v535 = vmul.f32 %v527, 0.2
    %v536 = vmul.f32 %v528, 0.2
    %v537 = vmul.f32 %v521, %v505
    %v538 = vmul.f32 %v522, %v506
    %v539 = vmul.f32 %v523, %v507
    %v540 = vmul.f32 %v524, %v508
    %v541 = vmul.f32 %v525, %v509
    %v542 = vmul.f32 %v526, %v510
    %v543 = vmul.f32 %v527, %v511
    %v544 = vmul.f32 %v528, %v512
    %v545 = vsub.f32 %v529, %v537
    %v546 = vsub.f32 %v530, %v538
    %v547 = vsub.f32 %v531, %v539
    %v548 = vsub.f32 %v532, %v540
    %v549 = vsub.f32 %v533, %v541
    %v550 = vsub.f32 %v534, %v542
    %v551 = vsub.f32 %v535, %v543
    %v552 = vsub.f32 %v536, %v544
    %v553 = vmul.f32 %v545, 500.0
    %v554 = vmul.f32 %v546, 500.0
    %v555 = vmul.f32 %v547, 500.0
    %v556 = vmul.f32 %v548, 500.0
    %v557 = vmul.f32 %v549, 500.0
    %v558 = vmul.f32 %v550, 500.0
    %v559 = vmul.f32 %v551, 500.0
    %v560 = vmul.f32 %v552, 500.0
    %vm561 = vcmp.lt.f32.partialorder %v505, 0.1
    %vm562 = vcmp.lt.f32.partialorder %v506, 0.1
    %vm563 = vcmp.lt.f32.partialorder %v507, 0.1
    %vm564 = vcmp.lt.f32.partialorder %v508, 0.1
    %vm565 = vcmp.lt.f32.partialorder %v509, 0.1
    %vm566 = vcmp.lt.f32.partialorder %v510, 0.1
    %vm567 = vcmp.lt.f32.partialorder %v511, 0.1
    %vm568 = vcmp.lt.f32.partialorder %v512, 0.1
    %v569 = vsub.f32 %v497, 0.05
    %v570 = vsub.f32 %v498, 0.05
    %v571 = vsub.f32 %v499, 0.05
    %v572 = vsub.f32 %v500, 0.05
    %v573 = vsub.f32 %v501, 0.05
    %v574 = vsub.f32 %v502, 0.05
    %v575 = vsub.f32 %v503, 0.05
    %v576 = vsub.f32 %v504, 0.05
    %v577 = vsel %vm561, %v553, %v569
    %v578 = vsel %vm562, %v554, %v570
    %v579 = vsel %vm563, %v555, %v571
    %v580 = vsel %vm564, %v556, %v572
    %v581 = vsel %vm565, %v557, %v573
    %v582 = vsel %vm566, %v558, %v574
    %v583 = vsel %vm567, %v559, %v575
    %v584 = vsel %vm568, %v560, %v576
    %v585 = vld [vmem:[%s6] sm:$0xff]
    %v586 = vld [vmem:[%s6 + $0x8] sm:$0xff]
    %v587 = vld [vmem:[%s6 + $0x10] sm:$0xff]
    %v588 = vld [vmem:[%s6 + $0x18] sm:$0xff]
    %v589 = vld [vmem:[%s6 + $0x20] sm:$0xff]
    %v590 = vld [vmem:[%s6 + $0x28] sm:$0xff]
    %v591 = vld [vmem:[%s6 + $0x30] sm:$0xff]
    %v592 = vld [vmem:[%s6 + $0x38] sm:$0xff]
    %594 = vset.pattern.permute.xlu0 0
    %595 = vperm.xlu0 %594, %v585
    %v596 = vpop.permute.xlu0 %595
    %599 = vset.pattern.permute.xlu0 0
    %600 = vperm.xlu0 %599, %v586
    %v601 = vpop.permute.xlu0 %600
    %604 = vset.pattern.permute.xlu0 0
    %605 = vperm.xlu0 %604, %v587
    %v606 = vpop.permute.xlu0 %605
    %609 = vset.pattern.permute.xlu0 0
    %610 = vperm.xlu0 %609, %v588
    %v611 = vpop.permute.xlu0 %610
    %614 = vset.pattern.permute.xlu0 0
    %615 = vperm.xlu0 %614, %v589
    %v616 = vpop.permute.xlu0 %615
    %619 = vset.pattern.permute.xlu0 0
    %620 = vperm.xlu0 %619, %v590
    %v621 = vpop.permute.xlu0 %620
    %624 = vset.pattern.permute.xlu0 0
    %625 = vperm.xlu0 %624, %v591
    %v626 = vpop.permute.xlu0 %625
    %629 = vset.pattern.permute.xlu0 0
    %630 = vperm.xlu0 %629, %v592
    %v631 = vpop.permute.xlu0 %630
    %v633 = vsub.f32 %v577, %v596
    %v634 = vsub.f32 %v578, %v601
    %v635 = vsub.f32 %v579, %v606
    %v636 = vsub.f32 %v580, %v611
    %v637 = vsub.f32 %v581, %v616
    %v638 = vsub.f32 %v582, %v621
    %v639 = vsub.f32 %v583, %v626
    %v640 = vsub.f32 %v584, %v631
    %v641 = vmax.f32 %v633, 0.0
    %v642 = vmax.f32 %v634, 0.0
    %v643 = vmax.f32 %v635, 0.0
    %v644 = vmax.f32 %v636, 0.0
    %v645 = vmax.f32 %v637, 0.0
    %v646 = vmax.f32 %v638, 0.0
    %v647 = vmax.f32 %v639, 0.0
    %v648 = vmax.f32 %v640, 0.0
    %v649 = vmul.f32 %v641, %v641
    %v650 = vmul.f32 %v642, %v642
    %v651 = vmul.f32 %v643, %v643
    %v652 = vmul.f32 %v644, %v644
    %v653 = vmul.f32 %v645, %v645
    %v654 = vmul.f32 %v646, %v646
    %v655 = vmul.f32 %v647, %v647
    %v656 = vmul.f32 %v648, %v648
    %v657 = vmul.f32 %v649, %v641
    %v658 = vmul.f32 %v650, %v642
    %v659 = vmul.f32 %v651, %v643
    %v660 = vmul.f32 %v652, %v644
    %v661 = vmul.f32 %v653, %v645
    %v662 = vmul.f32 %v654, %v646
    %v663 = vmul.f32 %v655, %v647
    %v664 = vmul.f32 %v656, %v648
    %v665 = vmul.f32 %v657, 0.2
    %v666 = vmul.f32 %v658, 0.2
    %v667 = vmul.f32 %v659, 0.2
    %v668 = vmul.f32 %v660, 0.2
    %v669 = vmul.f32 %v661, 0.2
    %v670 = vmul.f32 %v662, 0.2
    %v671 = vmul.f32 %v663, 0.2
    %v672 = vmul.f32 %v664, 0.2
    %v673 = vmul.f32 %v657, %v641
    %v674 = vmul.f32 %v658, %v642
    %v675 = vmul.f32 %v659, %v643
    %v676 = vmul.f32 %v660, %v644
    %v677 = vmul.f32 %v661, %v645
    %v678 = vmul.f32 %v662, %v646
    %v679 = vmul.f32 %v663, %v647
    %v680 = vmul.f32 %v664, %v648
    %v681 = vsub.f32 %v665, %v673
    %v682 = vsub.f32 %v666, %v674
    %v683 = vsub.f32 %v667, %v675
    %v684 = vsub.f32 %v668, %v676
    %v685 = vsub.f32 %v669, %v677
    %v686 = vsub.f32 %v670, %v678
    %v687 = vsub.f32 %v671, %v679
    %v688 = vsub.f32 %v672, %v680
    %v689 = vmul.f32 %v681, 500.0
    %v690 = vmul.f32 %v682, 500.0
    %v691 = vmul.f32 %v683, 500.0
    %v692 = vmul.f32 %v684, 500.0
    %v693 = vmul.f32 %v685, 500.0
    %v694 = vmul.f32 %v686, 500.0
    %v695 = vmul.f32 %v687, 500.0
    %v696 = vmul.f32 %v688, 500.0
    %vm697 = vcmp.lt.f32.partialorder %v641, 0.1
    %vm698 = vcmp.lt.f32.partialorder %v642, 0.1
    %vm699 = vcmp.lt.f32.partialorder %v643, 0.1
    %vm700 = vcmp.lt.f32.partialorder %v644, 0.1
    %vm701 = vcmp.lt.f32.partialorder %v645, 0.1
    %vm702 = vcmp.lt.f32.partialorder %v646, 0.1
    %vm703 = vcmp.lt.f32.partialorder %v647, 0.1
    %vm704 = vcmp.lt.f32.partialorder %v648, 0.1
    %v705 = vsub.f32 %v633, 0.05
    %v706 = vsub.f32 %v634, 0.05
    %v707 = vsub.f32 %v635, 0.05
    %v708 = vsub.f32 %v636, 0.05
    %v709 = vsub.f32 %v637, 0.05
    %v710 = vsub.f32 %v638, 0.05
    %v711 = vsub.f32 %v639, 0.05
    %v712 = vsub.f32 %v640, 0.05
    %v713 = vsel %vm697, %v689, %v705
    %v714 = vsel %vm698, %v690, %v706
    %v715 = vsel %vm699, %v691, %v707
    %v716 = vsel %vm700, %v692, %v708
    %v717 = vsel %vm701, %v693, %v709
    %v718 = vsel %vm702, %v694, %v710
    %v719 = vsel %vm703, %v695, %v711
    %v720 = vsel %vm704, %v696, %v712
    %v721 = vrcp.pop %v713
    %v722 = vrcp.pop %v714
    %v723 = vrcp.pop %v715
    %v724 = vrcp.pop %v716
    %v725 = vrcp.pop %v717
    %v726 = vrcp.pop %v718
    %v727 = vrcp.pop %v719
    %v728 = vrcp.pop %v720
    %vm729 = vcmp.gt.f32.partialorder %v713, 0.0
    %vm730 = vcmp.gt.f32.partialorder %v714, 0.0
    %vm731 = vcmp.gt.f32.partialorder %v715, 0.0
    %vm732 = vcmp.gt.f32.partialorder %v716, 0.0
    %vm733 = vcmp.gt.f32.partialorder %v717, 0.0
    %vm734 = vcmp.gt.f32.partialorder %v718, 0.0
    %vm735 = vcmp.gt.f32.partialorder %v719, 0.0
    %vm736 = vcmp.gt.f32.partialorder %v720, 0.0
    %v737 = vmul.f32 %v713, %v721
    %v738 = vmul.f32 %v714, %v722
    %v739 = vmul.f32 %v715, %v723
    %v740 = vmul.f32 %v716, %v724
    %v741 = vmul.f32 %v717, %v725
    %v742 = vmul.f32 %v718, %v726
    %v743 = vmul.f32 %v719, %v727
    %v744 = vmul.f32 %v720, %v728
    %v745 = vsub.f32 2.0, %v737
    %v746 = vsub.f32 2.0, %v738
    %v747 = vsub.f32 2.0, %v739
    %v748 = vsub.f32 2.0, %v740
    %v749 = vsub.f32 2.0, %v741
    %v750 = vsub.f32 2.0, %v742
    %v751 = vsub.f32 2.0, %v743
    %v752 = vsub.f32 2.0, %v744
    %v753 = vmul.f32 %v721, %v745
    %v754 = vmul.f32 %v722, %v746
    %v755 = vmul.f32 %v723, %v747
    %v756 = vmul.f32 %v724, %v748
    %v757 = vmul.f32 %v725, %v749
    %v758 = vmul.f32 %v726, %v750
    %v759 = vmul.f32 %v727, %v751
    %v760 = vmul.f32 %v728, %v752
    %v761 = vsel %vm729, %v753, inf
    %v762 = vsel %vm730, %v754, inf
    %v763 = vsel %vm731, %v755, inf
    %v764 = vsel %vm732, %v756, inf
    %v765 = vsel %vm733, %v757, inf
    %v766 = vsel %vm734, %v758, inf
    %v767 = vsel %vm735, %v759, inf
    %v768 = vsel %vm736, %v760, inf
    %769 = vst [vmem:[#allocation2] sm:$0xff] %v761
    %770 = vst [vmem:[#allocation2 + $0x8] sm:$0xff] %v762
    %771 = vst [vmem:[#allocation2 + $0x10] sm:$0xff] %v763
    %772 = vst [vmem:[#allocation2 + $0x18] sm:$0xff] %v764
    %773 = vst [vmem:[#allocation2 + $0x20] sm:$0xff] %v765
    %774 = vst [vmem:[#allocation2 + $0x28] sm:$0xff] %v766
    %775 = vst [vmem:[#allocation2 + $0x30] sm:$0xff] %v767
    %776 = vst [vmem:[#allocation2 + $0x38] sm:$0xff] %v768
    %v777 = vld [vmem:[%s7] sm:$0xff]
    %v778 = vld [vmem:[%s7 + $0x8] sm:$0xff]
    %v779 = vld [vmem:[%s7 + $0x10] sm:$0xff]
    %v780 = vld [vmem:[%s7 + $0x18] sm:$0xff]
    %v781 = vld [vmem:[%s8] sm:$0xff]
    %v782 = vld [vmem:[%s8 + $0x8] sm:$0xff]
    %v783 = vld [vmem:[%s8 + $0x10] sm:$0xff]
    %v784 = vld [vmem:[%s8 + $0x18] sm:$0xff]
    %786 = vset.pattern.permute.xlu0 0
    %787 = vperm.xlu0 %786, %v781
    %v788 = vpop.permute.xlu0 %787
    %791 = vset.pattern.permute.xlu0 0
    %792 = vperm.xlu0 %791, %v782
    %v793 = vpop.permute.xlu0 %792
    %796 = vset.pattern.permute.xlu0 0
    %797 = vperm.xlu0 %796, %v783
    %v798 = vpop.permute.xlu0 %797
    %801 = vset.pattern.permute.xlu0 0
    %802 = vperm.xlu0 %801, %v784
    %v803 = vpop.permute.xlu0 %802
    %vm805 = vcmask 31744
    %v807 = vsel %vm805, %v777, 0
    %v810 = vsel %vm805, %v778, 0
    %v813 = vsel %vm805, %v779, 0
    %v816 = vsel %vm805, %v780, 0
    %vm818 = vcmask 1043456
    %v820 = vsel %vm818, %v48, 0
    %822 = vmatprep.subr.mxu0 0.0
    %823 = vmatpush1.msra.mxu0 %v820
    %824 = vmatprep.subr.mxu0 0.0
    %825 = vmatpush1.msra.mxu0 0.0
    %826 = vmatprep.subr.mxu0 0.0
    %827 = vmatpush1.msra.mxu0 0.0
    %828 = vmatprep.subr.mxu0 0.0
    %829 = vmatpush1.msra.mxu0 0.0
    %830 = vmatprep.subr.mxu0 0.0
    %831 = vmatpush1.msra.mxu0 0.0
    %832 = vmatprep.subr.mxu0 0.0
    %833 = vmatpush1.msra.mxu0 0.0
    %834 = vmatprep.subr.mxu0 0.0
    %835 = vmatpush1.msra.mxu0 0.0
    %836 = vmatprep.subr.mxu0 0.0
    %837 = vmatpush1.msra.mxu0 0.0
    %838 = vmatprep.subr.mxu0 0.0
    %839 = vmatpush1.msra.mxu0 0.0
    %840 = vmatprep.subr.mxu0 0.0
    %841 = vmatpush1.msra.mxu0 0.0
    %842 = vmatprep.subr.mxu0 0.0
    %843 = vmatpush1.msra.mxu0 0.0
    %844 = vmatprep.subr.mxu0 0.0
    %845 = vmatpush1.msra.mxu0 0.0
    %846 = vmatprep.subr.mxu0 0.0
    %847 = vmatpush1.msra.mxu0 0.0
    %848 = vmatprep.subr.mxu0 0.0
    %849 = vmatpush1.msra.mxu0 0.0
    %850 = vmatprep.subr.mxu0 0.0
    %851 = vmatpush1.msra.mxu0 0.0
    %852 = vmatprep.subr.mxu0 0.0
    %853 = vmatpush1.msra.mxu0 0.0
    %854 = vmatprep.subr.mxu0 0.0
    %855 = vmatpush1.msra.mxu0 0.0
    %856 = vmatprep.subr.mxu0 0.0
    %857 = vmatpush1.msra.mxu0 0.0
    %858 = vmatprep.subr.mxu0 0.0
    %859 = vmatpush1.msra.mxu0 0.0
    %860 = vmatprep.subr.mxu0 0.0
    %861 = vmatpush1.msra.mxu0 0.0
    %862 = vmatprep.subr.mxu0 0.0
    %863 = vmatpush1.msra.mxu0 0.0
    %864 = vmatprep.subr.mxu0 0.0
    %865 = vmatpush1.msra.mxu0 0.0
    %866 = vmatprep.subr.mxu0 0.0
    %867 = vmatpush1.msra.mxu0 0.0
    %868 = vmatprep.subr.mxu0 0.0
    %869 = vmatpush1.msra.mxu0 0.0
    %870 = vmatprep.subr.mxu0 0.0
    %871 = vmatpush1.msra.mxu0 0.0
    %872 = vmatprep.subr.mxu0 0.0
    %873 = vmatpush1.msra.mxu0 0.0
    %874 = vmatprep.subr.mxu0 0.0
    %875 = vmatpush1.msra.mxu0 0.0
    %876 = vmatprep.subr.mxu0 0.0
    %877 = vmatpush1.msra.mxu0 0.0
    %878 = vmatprep.subr.mxu0 0.0
    %879 = vmatpush1.msra.mxu0 0.0
    %880 = vmatprep.subr.mxu0 0.0
    %881 = vmatpush1.msra.mxu0 0.0
    %882 = vmatprep.subr.mxu0 0.0
    %883 = vmatpush1.msra.mxu0 0.0
    %884 = vmatprep.subr.mxu0 0.0
    %885 = vmatpush1.msra.mxu0 0.0
    %886 = vmatprep.mubr.f32.mxu0 0.0
    %887 = vmatmul.mubr.f32.gmra.mrb[0].mxu0 %v807
    %v888 = vpop.f32.mrb[0].mxu0
    %v889 = vadd.f32 %v788, %v888
    %v890 = vpop.f32.mrb[0].mxu0
    %891 = vmatprep.mubr.f32.mxu0 0.0
    %892 = vmatmul.mubr.f32.gmra.mrb[0].mxu0 %v810
    %v893 = vpop.f32.mrb[0].mxu0
    %v894 = vadd.f32 %v793, %v893
    %v895 = vpop.f32.mrb[0].mxu0
    %896 = vmatprep.mubr.f32.mxu0 0.0
    %897 = vmatmul.mubr.f32.gmra.mrb[0].mxu0 %v813
    %v898 = vpop.f32.mrb[0].mxu0
    %v899 = vadd.f32 %v798, %v898
    %v900 = vpop.f32.mrb[0].mxu0
    %901 = vmatprep.mubr.f32.mxu0 0.0
    %902 = vmatmul.mubr.f32.gmra.mrb[0].mxu0 %v816
    %v903 = vpop.f32.mrb[0].mxu0
    %v904 = vadd.f32 %v803, %v903
    %v905 = vpop.f32.mrb[0].mxu0
    %906 = vdwg.mxu0
    %v907 = vmax.f32 %v889, 0.0
    %v908 = vmax.f32 %v894, 0.0
    %v909 = vmax.f32 %v899, 0.0
    %v910 = vmax.f32 %v904, 0.0
    %v911 = vld [vmem:[%s9] sm:$0xff]
    %v912 = vld [vmem:[%s9 + $0x8] sm:$0xff]
    %v913 = vld [vmem:[%s9 + $0x10] sm:$0xff]
    %v914 = vld [vmem:[%s9 + $0x18] sm:$0xff]
    %v915 = vld [vmem:[%s10] sm:$0xff]
    %v916 = vld [vmem:[%s10 + $0x8] sm:$0xff]
    %v917 = vld [vmem:[%s10 + $0x10] sm:$0xff]
    %v918 = vld [vmem:[%s10 + $0x18] sm:$0xff]
    %920 = vset.pattern.permute.xlu0 0
    %921 = vperm.xlu0 %920, %v915
    %v922 = vpop.permute.xlu0 %921
    %925 = vset.pattern.permute.xlu0 0
    %926 = vperm.xlu0 %925, %v916
    %v927 = vpop.permute.xlu0 %926
    %930 = vset.pattern.permute.xlu0 0
    %931 = vperm.xlu0 %930, %v917
    %v932 = vpop.permute.xlu0 %931
    %935 = vset.pattern.permute.xlu0 0
    %936 = vperm.xlu0 %935, %v918
    %v937 = vpop.permute.xlu0 %936
    %vm939 = vcmask 261120
    %v941 = vsel %vm939, %v911, 0
    %v944 = vsel %vm939, %v912, 0
    %v947 = vsel %vm939, %v913, 0
    %v950 = vsel %vm939, %v914, 0
    %952 = vmatprep.subr.mxu0 0.0
    %953 = vmatpush1.msra.mxu0 %v907
    %954 = vmatprep.subr.mxu0 0.0
    %955 = vmatpush1.msra.mxu0 %v908
    %956 = vmatprep.subr.mxu0 0.0
    %957 = vmatpush1.msra.mxu0 %v909
    %958 = vmatprep.subr.mxu0 0.0
    %959 = vmatpush1.msra.mxu0 %v910
    %960 = vmatprep.subr.mxu0 0.0
    %961 = vmatpush1.msra.mxu0 0.0
    %962 = vmatprep.subr.mxu0 0.0
    %963 = vmatpush1.msra.mxu0 0.0
    %964 = vmatprep.subr.mxu0 0.0
    %965 = vmatpush1.msra.mxu0 0.0
    %966 = vmatprep.subr.mxu0 0.0
    %967 = vmatpush1.msra.mxu0 0.0
    %968 = vmatprep.subr.mxu0 0.0
    %969 = vmatpush1.msra.mxu0 0.0
    %970 = vmatprep.subr.mxu0 0.0
    %971 = vmatpush1.msra.mxu0 0.0
    %972 = vmatprep.subr.mxu0 0.0
    %973 = vmatpush1.msra.mxu0 0.0
    %974 = vmatprep.subr.mxu0 0.0
    %975 = vmatpush1.msra.mxu0 0.0
    %976 = vmatprep.subr.mxu0 0.0
    %977 = vmatpush1.msra.mxu0 0.0
    %978 = vmatprep.subr.mxu0 0.0
    %979 = vmatpush1.msra.mxu0 0.0
    %980 = vmatprep.subr.mxu0 0.0
    %981 = vmatpush1.msra.mxu0 0.0
    %982 = vmatprep.subr.mxu0 0.0
    %983 = vmatpush1.msra.mxu0 0.0
    %984 = vmatprep.subr.mxu0 0.0
    %985 = vmatpush1.msra.mxu0 0.0
    %986 = vmatprep.subr.mxu0 0.0
    %987 = vmatpush1.msra.mxu0 0.0
    %988 = vmatprep.subr.mxu0 0.0
    %989 = vmatpush1.msra.mxu0 0.0
    %990 = vmatprep.subr.mxu0 0.0
    %991 = vmatpush1.msra.mxu0 0.0
    %992 = vmatprep.subr.mxu0 0.0
    %993 = vmatpush1.msra.mxu0 0.0
    %994 = vmatprep.subr.mxu0 0.0
    %995 = vmatpush1.msra.mxu0 0.0
    %996 = vmatprep.subr.mxu0 0.0
    %997 = vmatpush1.msra.mxu0 0.0
    %998 = vmatprep.subr.mxu0 0.0
    %999 = vmatpush1.msra.mxu0 0.0
    %1000 = vmatprep.subr.mxu0 0.0
    %1001 = vmatpush1.msra.mxu0 0.0
    %1002 = vmatprep.subr.mxu0 0.0
    %1003 = vmatpush1.msra.mxu0 0.0
    %1004 = vmatprep.subr.mxu0 0.0
    %1005 = vmatpush1.msra.mxu0 0.0
    %1006 = vmatprep.subr.mxu0 0.0
    %1007 = vmatpush1.msra.mxu0 0.0
    %1008 = vmatprep.subr.mxu0 0.0
    %1009 = vmatpush1.msra.mxu0 0.0
    %1010 = vmatprep.subr.mxu0 0.0
    %1011 = vmatpush1.msra.mxu0 0.0
    %1012 = vmatprep.subr.mxu0 0.0
    %1013 = vmatpush1.msra.mxu0 0.0
    %1014 = vmatprep.subr.mxu0 0.0
    %1015 = vmatpush1.msra.mxu0 0.0
    %1016 = vmatprep.mubr.f32.mxu0 0.0
    %1017 = vmatmul.mubr.f32.gmra.mrb[0].mxu0 %v941
    %v1018 = vpop.f32.mrb[0].mxu0
    %v1019 = vadd.f32 %v922, %v1018
    %v1020 = vpop.f32.mrb[0].mxu0
    %1021 = vmatprep.mubr.f32.mxu0 0.0
    %1022 = vmatmul.mubr.f32.gmra.mrb[0].mxu0 %v944
    %v1023 = vpop.f32.mrb[0].mxu0
    %v1024 = vadd.f32 %v927, %v1023
    %v1025 = vpop.f32.mrb[0].mxu0
    %1026 = vmatprep.mubr.f32.mxu0 0.0
    %1027 = vmatmul.mubr.f32.gmra.mrb[0].mxu0 %v947
    %v1028 = vpop.f32.mrb[0].mxu0
    %v1029 = vadd.f32 %v932, %v1028
    %v1030 = vpop.f32.mrb[0].mxu0
    %1031 = vmatprep.mubr.f32.mxu0 0.0
    %1032 = vmatmul.mubr.f32.gmra.mrb[0].mxu0 %v950
    %v1033 = vpop.f32.mrb[0].mxu0
    %v1034 = vadd.f32 %v937, %v1033
    %v1035 = vpop.f32.mrb[0].mxu0
    %1036 = vdwg.mxu0
    %v1037 = vmax.f32 %v1019, 0.0
    %v1038 = vmax.f32 %v1024, 0.0
    %v1039 = vmax.f32 %v1029, 0.0
    %v1040 = vmax.f32 %v1034, 0.0
    %v1041 = vld [vmem:[%s11] sm:$0xf]
    %v1042 = vld [vmem:[%s12] sm:$0xf]
    %1044 = vset.pattern.permute.xlu0 0
    %1045 = vperm.xlu0 %1044, %v1042
    %v1046 = vpop.permute.xlu0 %1045
    %v1049 = vsel %vm939, %v1041, 0
    %1051 = vmatprep.subr.mxu0 0.0
    %1052 = vmatpush1.msra.mxu0 %v1037
    %1053 = vmatprep.subr.mxu0 0.0
    %1054 = vmatpush1.msra.mxu0 %v1038
    %1055 = vmatprep.subr.mxu0 0.0
    %1056 = vmatpush1.msra.mxu0 %v1039
    %1057 = vmatprep.subr.mxu0 0.0
    %1058 = vmatpush1.msra.mxu0 %v1040
    %1059 = vmatprep.subr.mxu0 0.0
    %1060 = vmatpush1.msra.mxu0 0.0
    %1061 = vmatprep.subr.mxu0 0.0
    %1062 = vmatpush1.msra.mxu0 0.0
    %1063 = vmatprep.subr.mxu0 0.0
    %1064 = vmatpush1.msra.mxu0 0.0
    %1065 = vmatprep.subr.mxu0 0.0
    %1066 = vmatpush1.msra.mxu0 0.0
    %1067 = vmatprep.subr.mxu0 0.0
    %1068 = vmatpush1.msra.mxu0 0.0
    %1069 = vmatprep.subr.mxu0 0.0
    %1070 = vmatpush1.msra.mxu0 0.0
    %1071 = vmatprep.subr.mxu0 0.0
    %1072 = vmatpush1.msra.mxu0 0.0
    %1073 = vmatprep.subr.mxu0 0.0
    %1074 = vmatpush1.msra.mxu0 0.0
    %1075 = vmatprep.subr.mxu0 0.0
    %1076 = vmatpush1.msra.mxu0 0.0
    %1077 = vmatprep.subr.mxu0 0.0
    %1078 = vmatpush1.msra.mxu0 0.0
    %1079 = vmatprep.subr.mxu0 0.0
    %1080 = vmatpush1.msra.mxu0 0.0
    %1081 = vmatprep.subr.mxu0 0.0
    %1082 = vmatpush1.msra.mxu0 0.0
    %1083 = vmatprep.subr.mxu0 0.0
    %1084 = vmatpush1.msra.mxu0 0.0
    %1085 = vmatprep.subr.mxu0 0.0
    %1086 = vmatpush1.msra.mxu0 0.0
    %1087 = vmatprep.subr.mxu0 0.0
    %1088 = vmatpush1.msra.mxu0 0.0
    %1089 = vmatprep.subr.mxu0 0.0
    %1090 = vmatpush1.msra.mxu0 0.0
    %1091 = vmatprep.subr.mxu0 0.0
    %1092 = vmatpush1.msra.mxu0 0.0
    %1093 = vmatprep.subr.mxu0 0.0
    %1094 = vmatpush1.msra.mxu0 0.0
    %1095 = vmatprep.subr.mxu0 0.0
    %1096 = vmatpush1.msra.mxu0 0.0
    %1097 = vmatprep.subr.mxu0 0.0
    %1098 = vmatpush1.msra.mxu0 0.0
    %1099 = vmatprep.subr.mxu0 0.0
    %1100 = vmatpush1.msra.mxu0 0.0
    %1101 = vmatprep.subr.mxu0 0.0
    %1102 = vmatpush1.msra.mxu0 0.0
    %1103 = vmatprep.subr.mxu0 0.0
    %1104 = vmatpush1.msra.mxu0 0.0
    %1105 = vmatprep.subr.mxu0 0.0
    %1106 = vmatpush1.msra.mxu0 0.0
    %1107 = vmatprep.subr.mxu0 0.0
    %1108 = vmatpush1.msra.mxu0 0.0
    %1109 = vmatprep.subr.mxu0 0.0
    %1110 = vmatpush1.msra.mxu0 0.0
    %1111 = vmatprep.subr.mxu0 0.0
    %1112 = vmatpush1.msra.mxu0 0.0
    %1113 = vmatprep.subr.mxu0 0.0
    %1114 = vmatpush1.msra.mxu0 0.0
    %1115 = vmatprep.mubr.f32.mxu0 0.0
    %1116 = vmatmul.mubr.f32.gmra.mrb[0].mxu0 %v1049
    %v1117 = vpop.f32.mrb[0].mxu0
    %v1118 = vadd.f32 %v1046, %v1117
    %v1119 = vpop.f32.mrb[0].mxu0
    %1120 = vdwg.mxu0
    %v1121 = vrot.slane %v48, 6
    %vm1123 = vcmask 1041408
    %v1124 = vsel %vm1123, %v48, %v1121
    %v1125 = vmul.f32 %v1118, %v1124
    %1126 = vst [vmem:[#allocation4] sm:$0xf] %v1125
    // Predicated region
    $region54: #{tpu_custom_call.1} parent=1 // pred_check
      _
    $region55: #{tpu_custom_call.1} parent=1 // pred_check_branch
      %1128 = sbr.rel (0) target = $region57
    $region56: #{tpu_custom_call.1} parent=1 // pred_region
      %s1130 = ssub.s32 1024, 1024
      %1131 = vsyncadd [#allocation3], %s1130
      %s1132 = sshll.u32 [#allocation2], 4
      %s1133 = int_to_ptr.vmem [resolvable:$true] %s1132
      %1138 = dma.vmem_to_hbm [thread:$0]  %s1133, 1024, %s13, [#allocation3], 128, 128, 8
    $region57: #{tpu_custom_call.1} parent=1 // pred_fallthru
      _
    // Predicated region
    $region58: #{tpu_custom_call.1} parent=1 // pred_check
      _
    $region59: #{tpu_custom_call.1} parent=1 // pred_check_branch
      %1140 = sbr.rel (0) target = $region61
    $region60: #{tpu_custom_call.1} parent=1 // pred_region
      %s1142 = ssub.s32 64, 64
      %1143 = vsyncadd [#allocation5], %s1142
      %s1145 = sshll.u32 [#allocation4], 4
      %s1146 = int_to_ptr.vmem [resolvable:$true] %s1145
      %1148 = dma.vmem_to_hbm [thread:$0]  %s1146, 64, %s14, [#allocation5]
    $region61: #{tpu_custom_call.1} parent=1 // pred_fallthru
      _
    // Predicated region
    $region62: #{tpu_custom_call.1} parent=1 // pred_check
      _
    $region63: #{tpu_custom_call.1} parent=1 // pred_check_branch
      %1150 = sbr.rel (0) target = $region65
    $region64: #{tpu_custom_call.1} parent=1 // pred_region
      %1151 = dma.done [#allocation3], 1024
    $region65: #{tpu_custom_call.1} parent=1 // pred_fallthru
      _
    // Predicated region
    $region66: #{tpu_custom_call.1} parent=1 // pred_check
      _
    $region67: #{tpu_custom_call.1} parent=1 // pred_check_branch
      %1153 = sbr.rel (0) target = $region69
    $region68: #{tpu_custom_call.1} parent=1 // pred_region
      %1154 = dma.done [#allocation5], 64
    $region69: #{tpu_custom_call.1} parent=1 // pred_fallthru
      _
    %1155 = vsyncpa [#allocation3], 1
    %1156 = vsyncpa [#allocation5], 1

</llo_original>
